<compile_context>
chip_gen: v7x
topology: tpu7x:2x2x1
jax: 0.10.0
libtpu: 0.0.40
codegen_flags: <defaults>
</compile_context>

<pallas_src>
import functools
import math

import jax
import jax.numpy as jnp
from jax.experimental import pallas as pl
from jax.experimental.pallas import tpu as pltpu

Q_GROUP_SIZE = 64
BIT = 4                       # fixed by the module
GROUPS_PER_ROW = 8            # 8 * 64 = 512 lanes per row (lane-dense)
MAX_TILE_ROWS = 1024          # (1024, 512) f32 block = 2 MiB


def _round_up(a, b):
    return ((a + b - 1) // b) * b


def _q40_kernel(x_ref, o_ref, *, q_group_size):
    # x_ref: (T, C) lane-dense tile; C = n_grp * q_group_size
    t_rows, cols = x_ref.shape
    n_grp = cols // q_group_size

    # Per-group scale on narrow slices (cheap XLU reduces), broadcast back to
    # the dense tile so the heavy elementwise math stays full-width.
    scale_parts = []
    inv_parts = []
    for g in range(n_grp):
        lo = g * q_group_size
        seg = x_ref[:, lo:lo + q_group_size].astype(jnp.float32)        # (T, 64)
        # abs_max_val = amax(|x|) / -8   (negative scale, as in the reference)
        s = jnp.max(jnp.abs(seg), axis=1, keepdims=True) * (-0.125)     # (T, 1)
        inv = 1.0 / s                                                   # exact, matches reference
        scale_parts.append(jnp.broadcast_to(s, (t_rows, q_group_size)))
        inv_parts.append(jnp.broadcast_to(inv, (t_rows, q_group_size)))
    scale = jnp.concatenate(scale_parts, axis=1)        # (T, C)
    inv_scale = jnp.concatenate(inv_parts, axis=1)      # (T, C)

    x = x_ref[...].astype(jnp.float32)                  # (T, C) dense
    # t = min(x * (1/scale) + 8.5, 15)  -> always >= 0.5 (or NaN for all-zero
    # groups, same as the PyTorch reference), so sign(t)*floor(t) == floor(t).
    t = jnp.minimum(x * inv_scale + 8.5, 15.0)
    q = jnp.floor(t)
    o_ref[...] = ((q - 8.0) * scale).astype(jnp.bfloat16)


def q40_quantize(x, q_group_size=Q_GROUP_SIZE):
    org_shape = x.shape
    assert org_shape[-1] % q_group_size == 0, "last dim must be divisible by group size"

    total = math.prod(org_shape)
    cols = GROUPS_PER_ROW * q_group_size                # 512 for the default group size

    # Row count (each row = GROUPS_PER_ROW whole groups), sublane-aligned.
    rows = _round_up(_round_up(total, cols) // cols, 8)

    # Tile choice: bounded blocks (never one giant full-extent block), and at
    # least 2 grid steps when possible so v7x's two TensorCores both get work.
    if rows <= MAX_TILE_ROWS:
        num_tiles = 2 if (rows >= 16 and rows % 16 == 0) else 1
    else:
        num_tiles = -(-rows // MAX_TILE_ROWS)
    tile_rows = _round_up(-(-rows // num_tiles), 8)
    rows_padded = tile_rows * num_tiles

    # Flatten in native dtype (no wrapper f32 upcast); pad with whole fake
    # groups of 1.0 so groups never straddle the pad boundary.
    flat = jnp.reshape(x, (-1,))
    padded_total = rows_padded * cols
    if padded_total != total:
        pad = padded_total - total
        flat = jnp.concatenate([flat, jnp.ones((pad,), dtype=flat.dtype)])
    x2 = jnp.reshape(flat, (rows_padded, cols))

    grid = (num_tiles,)
    kernel = functools.partial(_q40_kernel, q_group_size=q_group_size)

    out2 = pl.pallas_call(
        kernel,
        out_shape=jax.ShapeDtypeStruct((rows_padded, cols), jnp.bfloat16),
        grid_spec=pltpu.PrefetchScalarGridSpec(
            num_scalar_prefetch=0,
            grid=grid,
            in_specs=[pl.BlockSpec((tile_rows, cols), lambda i: (i, 0))],
            out_specs=pl.BlockSpec((tile_rows, cols), lambda i: (i, 0)),
        ),
        compiler_params=pltpu.CompilerParams(
            dimension_semantics=("parallel",),
            vmem_limit_bytes=32 * 1024 * 1024,
        ),
    )(x2)

    out_flat = jnp.reshape(out2, (-1,))
    if padded_total != total:
        out_flat = out_flat[:total]
    return jnp.reshape(out_flat, org_shape)


def _q40_reference(x, q_group_size=Q_GROUP_SIZE):
    # Pure-JAX reference mirroring the PyTorch forward exactly (incl. sign).
    org_shape = x.shape
    x2 = jnp.reshape(x, (-1, q_group_size)).astype(jnp.float32)
    abs_max_val = jnp.max(jnp.abs(x2), axis=1, keepdims=True) / -8.0
    t = jnp.minimum(jnp.full_like(x2, 15.0), x2 * (1.0 / abs_max_val) + 8.5)
    q = jnp.sign(t) * jnp.floor(t)
    y = ((q - 8.0) * abs_max_val).astype(jnp.bfloat16)
    return jnp.reshape(y, org_shape)


if __name__ == "__main__":
    key = jax.random.PRNGKey(0)

    # Main case: divides the lane-dense layout evenly (no padding path).
    x = jax.random.normal(key, (2, 4, 16, 64), dtype=jnp.float32)
    out = jax.block_until_ready(q40_quantize(x))
    ref = jax.block_until_ready(_q40_reference(x))
    assert out.shape == x.shape
    assert out.dtype == jnp.bfloat16
    assert jnp.allclose(out.astype(jnp.float32), ref.astype(jnp.float32),
                        atol=1e-2, rtol=1e-2)

    # Second case: exercises the padding path (960 elems -> padded rows).
    x2 = jax.random.normal(jax.random.PRNGKey(1), (5, 3, 64), dtype=jnp.float32)
    out2 = jax.block_until_ready(q40_quantize(x2))
    ref2 = jax.block_until_ready(_q40_reference(x2))
    assert out2.shape == x2.shape
    assert out2.dtype == jnp.bfloat16
    assert jnp.allclose(out2.astype(jnp.float32), ref2.astype(jnp.float32),
                        atol=1e-2, rtol=1e-2)

    print("KERNEL_OK")
</pallas_src>

<mosaic_0001>
module attributes {stable_mosaic.version = 11 : i64} {
  func.func @_q40_kernel(%arg0: i32, %arg1: memref<8x512xf32, #tpu.memory_space<vmem>>, %arg2: memref<8x512xbf16, #tpu.memory_space<vmem>>) attributes {dimension_semantics = [#tpu.dimension_semantics<parallel>], iteration_bounds = array<i64: 2>, scalar_prefetch = 0 : i64, scratch_operands = 0 : i64, tpu.core_type = #tpu.core_type<tc>, window_params = [{transform_indices = @transform_0, window_bounds = array<i64: 8, 512>}, {transform_indices = @transform_1, window_bounds = array<i64: 8, 512>}]} {
    %c0 = arith.constant 0 : index
    %c0_0 = arith.constant 0 : index
    %0 = vector.load %arg1[%c0, %c0_0] : memref<8x512xf32, #tpu.memory_space<vmem>>, vector<8x64xf32>
    %1 = math.absf %0 : vector<8x64xf32>
    %cst = arith.constant dense<0xFF800000> : vector<8xf32>
    %2 = vector.multi_reduction <maximumf>, %1, %cst [1] : vector<8x64xf32> to vector<8xf32>
    %3 = vector.shape_cast %2 : vector<8xf32> to vector<8x1xf32>
    %cst_1 = arith.constant -1.250000e-01 : f32
    %4 = vector.broadcast %cst_1 : f32 to vector<8x1xf32>
    %5 = arith.mulf %3, %4 : vector<8x1xf32>
    %cst_2 = arith.constant 1.000000e+00 : f32
    %6 = vector.broadcast %cst_2 : f32 to vector<8x1xf32>
    %7 = arith.divf %6, %5 : vector<8x1xf32>
    %8 = vector.shape_cast %5 : vector<8x1xf32> to vector<8x1xf32>
    %9 = vector.broadcast %8 : vector<8x1xf32> to vector<8x64xf32>
    %10 = vector.shape_cast %7 : vector<8x1xf32> to vector<8x1xf32>
    %11 = vector.broadcast %10 : vector<8x1xf32> to vector<8x64xf32>
    %c0_3 = arith.constant 0 : index
    %c64 = arith.constant 64 : index
    %12 = vector.load %arg1[%c0_3, %c64] : memref<8x512xf32, #tpu.memory_space<vmem>>, vector<8x64xf32>
    %13 = math.absf %12 : vector<8x64xf32>
    %cst_4 = arith.constant dense<0xFF800000> : vector<8xf32>
    %14 = vector.multi_reduction <maximumf>, %13, %cst_4 [1] : vector<8x64xf32> to vector<8xf32>
    %15 = vector.shape_cast %14 : vector<8xf32> to vector<8x1xf32>
    %cst_5 = arith.constant -1.250000e-01 : f32
    %16 = vector.broadcast %cst_5 : f32 to vector<8x1xf32>
    %17 = arith.mulf %15, %16 : vector<8x1xf32>
    %cst_6 = arith.constant 1.000000e+00 : f32
    %18 = vector.broadcast %cst_6 : f32 to vector<8x1xf32>
    %19 = arith.divf %18, %17 : vector<8x1xf32>
    %20 = vector.shape_cast %17 : vector<8x1xf32> to vector<8x1xf32>
    %21 = vector.broadcast %20 : vector<8x1xf32> to vector<8x64xf32>
    %22 = vector.shape_cast %19 : vector<8x1xf32> to vector<8x1xf32>
    %23 = vector.broadcast %22 : vector<8x1xf32> to vector<8x64xf32>
    %c0_7 = arith.constant 0 : index
    %c128 = arith.constant 128 : index
    %24 = vector.load %arg1[%c0_7, %c128] : memref<8x512xf32, #tpu.memory_space<vmem>>, vector<8x64xf32>
    %25 = math.absf %24 : vector<8x64xf32>
    %cst_8 = arith.constant dense<0xFF800000> : vector<8xf32>
    %26 = vector.multi_reduction <maximumf>, %25, %cst_8 [1] : vector<8x64xf32> to vector<8xf32>
    %27 = vector.shape_cast %26 : vector<8xf32> to vector<8x1xf32>
    %cst_9 = arith.constant -1.250000e-01 : f32
    %28 = vector.broadcast %cst_9 : f32 to vector<8x1xf32>
    %29 = arith.mulf %27, %28 : vector<8x1xf32>
    %cst_10 = arith.constant 1.000000e+00 : f32
    %30 = vector.broadcast %cst_10 : f32 to vector<8x1xf32>
    %31 = arith.divf %30, %29 : vector<8x1xf32>
    %32 = vector.shape_cast %29 : vector<8x1xf32> to vector<8x1xf32>
    %33 = vector.broadcast %32 : vector<8x1xf32> to vector<8x64xf32>
    %34 = vector.shape_cast %31 : vector<8x1xf32> to vector<8x1xf32>
    %35 = vector.broadcast %34 : vector<8x1xf32> to vector<8x64xf32>
    %c0_11 = arith.constant 0 : index
    %c192 = arith.constant 192 : index
    %36 = vector.load %arg1[%c0_11, %c192] : memref<8x512xf32, #tpu.memory_space<vmem>>, vector<8x64xf32>
    %37 = math.absf %36 : vector<8x64xf32>
    %cst_12 = arith.constant dense<0xFF800000> : vector<8xf32>
    %38 = vector.multi_reduction <maximumf>, %37, %cst_12 [1] : vector<8x64xf32> to vector<8xf32>
    %39 = vector.shape_cast %38 : vector<8xf32> to vector<8x1xf32>
    %cst_13 = arith.constant -1.250000e-01 : f32
    %40 = vector.broadcast %cst_13 : f32 to vector<8x1xf32>
    %41 = arith.mulf %39, %40 : vector<8x1xf32>
    %cst_14 = arith.constant 1.000000e+00 : f32
    %42 = vector.broadcast %cst_14 : f32 to vector<8x1xf32>
    %43 = arith.divf %42, %41 : vector<8x1xf32>
    %44 = vector.shape_cast %41 : vector<8x1xf32> to vector<8x1xf32>
    %45 = vector.broadcast %44 : vector<8x1xf32> to vector<8x64xf32>
    %46 = vector.shape_cast %43 : vector<8x1xf32> to vector<8x1xf32>
    %47 = vector.broadcast %46 : vector<8x1xf32> to vector<8x64xf32>
    %c0_15 = arith.constant 0 : index
    %c256 = arith.constant 256 : index
    %48 = vector.load %arg1[%c0_15, %c256] : memref<8x512xf32, #tpu.memory_space<vmem>>, vector<8x64xf32>
    %49 = math.absf %48 : vector<8x64xf32>
    %cst_16 = arith.constant dense<0xFF800000> : vector<8xf32>
    %50 = vector.multi_reduction <maximumf>, %49, %cst_16 [1] : vector<8x64xf32> to vector<8xf32>
    %51 = vector.shape_cast %50 : vector<8xf32> to vector<8x1xf32>
    %cst_17 = arith.constant -1.250000e-01 : f32
    %52 = vector.broadcast %cst_17 : f32 to vector<8x1xf32>
    %53 = arith.mulf %51, %52 : vector<8x1xf32>
    %cst_18 = arith.constant 1.000000e+00 : f32
    %54 = vector.broadcast %cst_18 : f32 to vector<8x1xf32>
    %55 = arith.divf %54, %53 : vector<8x1xf32>
    %56 = vector.shape_cast %53 : vector<8x1xf32> to vector<8x1xf32>
    %57 = vector.broadcast %56 : vector<8x1xf32> to vector<8x64xf32>
    %58 = vector.shape_cast %55 : vector<8x1xf32> to vector<8x1xf32>
    %59 = vector.broadcast %58 : vector<8x1xf32> to vector<8x64xf32>
    %c0_19 = arith.constant 0 : index
    %c320 = arith.constant 320 : index
    %60 = vector.load %arg1[%c0_19, %c320] : memref<8x512xf32, #tpu.memory_space<vmem>>, vector<8x64xf32>
    %61 = math.absf %60 : vector<8x64xf32>
    %cst_20 = arith.constant dense<0xFF800000> : vector<8xf32>
    %62 = vector.multi_reduction <maximumf>, %61, %cst_20 [1] : vector<8x64xf32> to vector<8xf32>
    %63 = vector.shape_cast %62 : vector<8xf32> to vector<8x1xf32>
    %cst_21 = arith.constant -1.250000e-01 : f32
    %64 = vector.broadcast %cst_21 : f32 to vector<8x1xf32>
    %65 = arith.mulf %63, %64 : vector<8x1xf32>
    %cst_22 = arith.constant 1.000000e+00 : f32
    %66 = vector.broadcast %cst_22 : f32 to vector<8x1xf32>
    %67 = arith.divf %66, %65 : vector<8x1xf32>
    %68 = vector.shape_cast %65 : vector<8x1xf32> to vector<8x1xf32>
    %69 = vector.broadcast %68 : vector<8x1xf32> to vector<8x64xf32>
    %70 = vector.shape_cast %67 : vector<8x1xf32> to vector<8x1xf32>
    %71 = vector.broadcast %70 : vector<8x1xf32> to vector<8x64xf32>
    %c0_23 = arith.constant 0 : index
    %c384 = arith.constant 384 : index
    %72 = vector.load %arg1[%c0_23, %c384] : memref<8x512xf32, #tpu.memory_space<vmem>>, vector<8x64xf32>
    %73 = math.absf %72 : vector<8x64xf32>
    %cst_24 = arith.constant dense<0xFF800000> : vector<8xf32>
    %74 = vector.multi_reduction <maximumf>, %73, %cst_24 [1] : vector<8x64xf32> to vector<8xf32>
    %75 = vector.shape_cast %74 : vector<8xf32> to vector<8x1xf32>
    %cst_25 = arith.constant -1.250000e-01 : f32
    %76 = vector.broadcast %cst_25 : f32 to vector<8x1xf32>
    %77 = arith.mulf %75, %76 : vector<8x1xf32>
    %cst_26 = arith.constant 1.000000e+00 : f32
    %78 = vector.broadcast %cst_26 : f32 to vector<8x1xf32>
    %79 = arith.divf %78, %77 : vector<8x1xf32>
    %80 = vector.shape_cast %77 : vector<8x1xf32> to vector<8x1xf32>
    %81 = vector.broadcast %80 : vector<8x1xf32> to vector<8x64xf32>
    %82 = vector.shape_cast %79 : vector<8x1xf32> to vector<8x1xf32>
    %83 = vector.broadcast %82 : vector<8x1xf32> to vector<8x64xf32>
    %c0_27 = arith.constant 0 : index
    %c448 = arith.constant 448 : index
    %84 = vector.load %arg1[%c0_27, %c448] : memref<8x512xf32, #tpu.memory_space<vmem>>, vector<8x64xf32>
    %85 = math.absf %84 : vector<8x64xf32>
    %cst_28 = arith.constant dense<0xFF800000> : vector<8xf32>
    %86 = vector.multi_reduction <maximumf>, %85, %cst_28 [1] : vector<8x64xf32> to vector<8xf32>
    %87 = vector.shape_cast %86 : vector<8xf32> to vector<8x1xf32>
    %cst_29 = arith.constant -1.250000e-01 : f32
    %88 = vector.broadcast %cst_29 : f32 to vector<8x1xf32>
    %89 = arith.mulf %87, %88 : vector<8x1xf32>
    %cst_30 = arith.constant 1.000000e+00 : f32
    %90 = vector.broadcast %cst_30 : f32 to vector<8x1xf32>
    %91 = arith.divf %90, %89 : vector<8x1xf32>
    %92 = vector.shape_cast %89 : vector<8x1xf32> to vector<8x1xf32>
    %93 = vector.broadcast %92 : vector<8x1xf32> to vector<8x64xf32>
    %94 = vector.shape_cast %91 : vector<8x1xf32> to vector<8x1xf32>
    %95 = vector.broadcast %94 : vector<8x1xf32> to vector<8x64xf32>
    %96 = tpu.concatenate %9, %21, %33, %45, %57, %69, %81, %93 in 1 : vector<8x64xf32>, vector<8x64xf32>, vector<8x64xf32>, vector<8x64xf32>, vector<8x64xf32>, vector<8x64xf32>, vector<8x64xf32>, vector<8x64xf32> -> vector<8x512xf32>
    %97 = tpu.concatenate %11, %23, %35, %47, %59, %71, %83, %95 in 1 : vector<8x64xf32>, vector<8x64xf32>, vector<8x64xf32>, vector<8x64xf32>, vector<8x64xf32>, vector<8x64xf32>, vector<8x64xf32>, vector<8x64xf32> -> vector<8x512xf32>
    %c0_31 = arith.constant 0 : index
    %c0_32 = arith.constant 0 : index
    %98 = vector.load %arg1[%c0_31, %c0_32] : memref<8x512xf32, #tpu.memory_space<vmem>>, vector<8x512xf32>
    %99 = arith.mulf %98, %97 : vector<8x512xf32>
    %cst_33 = arith.constant 8.500000e+00 : f32
    %100 = vector.broadcast %cst_33 : f32 to vector<8x512xf32>
    %101 = arith.addf %99, %100 : vector<8x512xf32>
    %cst_34 = arith.constant 1.500000e+01 : f32
    %102 = vector.broadcast %cst_34 : f32 to vector<8x512xf32>
    %103 = arith.minimumf %101, %102 : vector<8x512xf32>
    %104 = math.floor %103 : vector<8x512xf32>
    %cst_35 = arith.constant 8.000000e+00 : f32
    %105 = vector.broadcast %cst_35 : f32 to vector<8x512xf32>
    %106 = arith.subf %104, %105 : vector<8x512xf32>
    %107 = arith.mulf %106, %96 : vector<8x512xf32>
    %108 = arith.truncf %107 : vector<8x512xf32> to vector<8x512xbf16>
    %c0_36 = arith.constant 0 : index
    %c0_37 = arith.constant 0 : index
    %109 = vector.load %arg2[%c0_36, %c0_37] : memref<8x512xbf16, #tpu.memory_space<vmem>>, vector<8x512xbf16>
    tpu.vector_store %arg2[%c0_36, %c0_37], %108 {strides = array<i32>} : memref<8x512xbf16, #tpu.memory_space<vmem>>, vector<8x512xbf16>,
    return
  }
  func.func @transform_0(%arg0: i32) -> (i32, i32) {
    %c0_i32 = arith.constant 0 : i32
    %c0_i32_0 = arith.constant 0 : i32
    return %arg0, %c0_i32 : i32, i32
  }
  func.func @transform_1(%arg0: i32) -> (i32, i32) {
    %c0_i32 = arith.constant 0 : i32
    %c0_i32_0 = arith.constant 0 : i32
    return %arg0, %c0_i32 : i32, i32
  }
}

</mosaic_0001>

<llo_original>
// kernel: tpu_custom_call.1
$region0: #{tpu_custom_call.1}
  #allocation0 [shape = 'u32[]', space=smem, size = 0x4, offset = 0x4, fixed_abs, tag = 'smem constant byte address 0x4 - core index']
  #allocation1 [shape = 'u32[144,128]{1,0:T(1,128)}', space=vmem, size = 0x12000, scoped, tag = 'internal scratch']
  %s0 = inlined_call_operand.hbm [shape: f32[16,512], index: 0, kind: input, shape index: {}]
  %s1 = inlined_call_operand.hbm [shape: bf16[16,512], index: 1, kind: output, shape index: {}]
  %s2 = sld [smem:[#allocation0]]
  $region41: #{tpu_custom_call.1} parent=0
    _
  %s4 = ssub.s32 1, %s2
  %s5 = scalar_select 0, %s4, %s2
  $region1: #{tpu_custom_call.1} parent=0
    #allocation2 [shape = 'u8[32768]{0}', space=vmem, size = 0x8000, scoped, tag = 'input window, operand 0']
    #allocation3 [shape = 's32[2]{0}', space=sflag, size = 0x8, scoped, tag = 'scoped memory for tpu_custom_call.1']
    #allocation4 [shape = 's32[2]{0}', space=sflag, size = 0x8, scoped, tag = 'scoped memory for tpu_custom_call.1']
    #allocation5 [shape = 'u8[16384]{0}', space=vmem, size = 0x4000, scoped, tag = 'output window, operand 0']
    %6 = vsyncpa [#allocation3], 0
    %s7 = scalar_lea.sflag [#allocation3], 1
    %8 = vsyncpa %s7, 0
    %9 = vsyncpa [#allocation4], 0
    %s10 = scalar_lea.sflag [#allocation4], 1
    %11 = vsyncpa %s10, 0
    loop: start=0, step=1, limit=4
    $region2: #{tpu_custom_call.1} parent=1 // loop_pre_header
      _
    $region3: #{tpu_custom_call.1} parent=1 // loop_header
      %s13 = sphi 0, %s17
      %p14 = scmp.ge.s32.totalorder %s13, 4
      %s23 = sphi 0, %s25
      %s26 = sphi 0, %s23
      %s27 = sphi 0, %s26
      %s43 = sphi 0, %s27
      %s49 = sphi 0, %s51
      %s52 = sphi 0, %s49
      %s53 = sphi 0, %s52
      %s69 = sphi 0, %s53
    $region4: #{tpu_custom_call.1} parent=1 // loop_header_branch
      %16 = sbr.rel (%p14) target = $region8
    $region5: #{tpu_custom_call.1} parent=1 // loop_body
      %s18 = ssub.s32 %s13, 1
      %s19 = ssub.s32 %s13, 2
      %s20 = sadd.s32 %s13, 1
      %s21 = ssub.s32 %s13, %s20
      %p22 = scmp.eq.s32.totalorder %s21, 0
      %s24 = sadd.s32 %s23, 1
      %s25 = scalar_select %p22, %s23, %s24
      %p28 = pneg %p22
      %p29 = scmp.eq.s32.totalorder %s13, 1
      %p30 = por %p28, %p29
      %p31 = scmp.ne.s32.totalorder %s23, %s26
      %p32 = scmp.eq.s32.totalorder %s13, 0
      %p33 = por %p31, %p32
      %p34 = scmp.ne.s32.totalorder %s23, %s26
      %p35 = scmp.eq.s32.totalorder %s18, 1
      %p36 = por %p34, %p35
      %p37 = scmp.ne.s32.totalorder %s26, %s27
      %p38 = scmp.eq.s32.totalorder %s18, 0
      %p39 = por %p37, %p38
      %p40 = scmp.ne.s32.totalorder %s26, %s27
      %p41 = scmp.eq.s32.totalorder %s19, 1
      %p42 = por %p40, %p41
      %p44 = scmp.ne.s32.totalorder %s27, %s43
      %p45 = scmp.eq.s32.totalorder %s19, 0
      %p46 = por %p44, %p45
      %s47 = ssub.s32 %s13, %s20
      %p48 = scmp.eq.s32.totalorder %s47, 0
      %s50 = sadd.s32 %s49, 1
      %s51 = scalar_select %p48, %s49, %s50
      %p54 = pneg %p48
      %p55 = scmp.eq.s32.totalorder %s13, 1
      %p56 = por %p54, %p55
      %p57 = scmp.ne.s32.totalorder %s49, %s52
      %p58 = scmp.eq.s32.totalorder %s13, 0
      %p59 = por %p57, %p58
      %p60 = scmp.ne.s32.totalorder %s49, %s52
      %p61 = scmp.eq.s32.totalorder %s18, 1
      %p62 = por %p60, %p61
      %p63 = scmp.ne.s32.totalorder %s52, %s53
      %p64 = scmp.eq.s32.totalorder %s18, 0
      %p65 = por %p63, %p64
      %p66 = scmp.ne.s32.totalorder %s52, %s53
      %p67 = scmp.eq.s32.totalorder %s19, 1
      %p68 = por %p66, %p67
      %p70 = scmp.ne.s32.totalorder %s53, %s69
      %p71 = scmp.eq.s32.totalorder %s19, 0
      %p72 = por %p70, %p71
      %p73 = scmp.le.s32.totalorder 1, %s13
      %p74 = scmp.lt.s32.totalorder %s13, 3
      %p75 = pnand %p73, %p74
      %p76 = pneg %p75
      // Predicated region
      $region9: #{tpu_custom_call.1} parent=5 // pred_check
        _
      $region10: #{tpu_custom_call.1} parent=5 // pred_check_branch
        %78 = sbr.rel (%p75) target = $region12
      $region11: #{tpu_custom_call.1} parent=5 // pred_region
        %s79 = ssub.s32 %s13, 1
      $region12: #{tpu_custom_call.1} parent=5 // pred_fallthru
        _
      %p80 = scmp.lt.s32.totalorder %s13, 2
      // Predicated region
      $region13: #{tpu_custom_call.1} parent=5 // pred_check
        %p81 = pneg %p80
      $region14: #{tpu_custom_call.1} parent=5 // pred_check_branch
        %83 = sbr.rel (%p81) target = $region16
      $region15: #{tpu_custom_call.1} parent=5 // pred_region
        // Predicated region
        $region17: #{tpu_custom_call.1} parent=15 // pred_check
          %p84 = pneg %p33
        $region18: #{tpu_custom_call.1} parent=15 // pred_check_branch
          %86 = sbr.rel (%p84) target = $region20
        $region19: #{tpu_custom_call.1} parent=15 // pred_region
          %s87 = sand.u32 %s23, 1
          %s88 = scalar_lea.sflag [#allocation3], %s87
          %s89 = sand.u32 %s23, 1
          %s90 = smul.addr %s89, 32
          %s91 = scalar_lea.vmem [#allocation2], %s90
          %s93 = ssub.s32 512, 512
          %94 = vsyncadd %s88, %s93
          %s95 = smul.addr %s13, 4
          %s96 = smul.addr %s95, 128
          %s97 = scalar_lea.hbm %s0, %s96
          %s99 = sshll.u32 %s91, 4
          %s100 = int_to_ptr.vmem [resolvable:$true] %s99
          %102 = dma.hbm_to_vmem [thread:$0]  %s97, 512, %s100, %s88
        $region20: #{tpu_custom_call.1} parent=15 // pred_fallthru
          _
      $region16: #{tpu_custom_call.1} parent=5 // pred_fallthru
        _
      %p103 = scmp.le.s32.totalorder 1, %s13
      %p104 = scmp.lt.s32.totalorder %s13, 3
      %p105 = pnand %p103, %p104
      %p106 = pneg %p105
      // Predicated region
      $region21: #{tpu_custom_call.1} parent=5 // pred_check
        _
      $region22: #{tpu_custom_call.1} parent=5 // pred_check_branch
        %108 = sbr.rel (%p105) target = $region24
      $region23: #{tpu_custom_call.1} parent=5 // pred_region
        %s109 = ssub.s32 %s13, 1
        %s110 = sand.u32 %s26, 1
        %s111 = scalar_lea.sflag [#allocation3], %s110
        %s112 = sand.u32 %s26, 1
        %s113 = smul.addr %s112, 32
        %s114 = scalar_lea.vmem [#allocation2], %s113
        // Predicated region
        $region25: #{tpu_custom_call.1} parent=23 // pred_check
          %p115 = pneg %p39
        $region26: #{tpu_custom_call.1} parent=23 // pred_check_branch
          %117 = sbr.rel (%p115) target = $region28
        $region27: #{tpu_custom_call.1} parent=23 // pred_region
          %118 = dma.done %s111, 512
        $region28: #{tpu_custom_call.1} parent=23 // pred_fallthru
          _
        %s119 = sand.u32 %s26, 1
        %s120 = scalar_lea.sflag [#allocation3], %s119
        %s121 = sand.u32 %s26, 1
        %s122 = smul.addr %s121, 32
        %s123 = scalar_lea.vmem [#allocation2], %s122
        %p124 = pneg %p39
        %p125 = pneg %p36
        %p126 = pneg %p65
        %p127 = pneg %p62
        %s128 = sand.u32 %s52, 1
        %s129 = scalar_lea.sflag [#allocation4], %s128
        %s130 = sand.u32 %s52, 1
        %s131 = smul.addr %s130, 16
        %s132 = scalar_lea.vmem [#allocation5], %s131
        %v133 = vld [vmem:[%s114] sm:$0xff]
        %v134 = vand.u32 2147483647, %v133
        %vm135 = vcmask 523264
        %v136 = vsel %vm135, %v134, -inf
        %137 = vmax.xlane.f32.xlu0 %v136
        %v138 = vpop.xlane.xlu0 %137
        %v139 = vmul.f32 %v138, -0.125
        %v140 = vrcp.pop %v139
        %v141 = vmul.f32 1.0, %v140
        %vm142 = vcmask 1048064
        %v143 = vsel %vm142, %v134, -inf
        %144 = vmax.xlane.f32.xlu0 %v143
        %v145 = vpop.xlane.xlu0 %144
        %v146 = vmul.f32 %v145, -0.125
        %v147 = vrcp.pop %v146
        %v148 = vmul.f32 1.0, %v147
        %v149 = vld [vmem:[%s114 + $0x8] sm:$0xff]
        %v150 = vand.u32 2147483647, %v149
        %v151 = vsel %vm135, %v150, -inf
        %152 = vmax.xlane.f32.xlu0 %v151
        %v153 = vpop.xlane.xlu0 %152
        %v154 = vmul.f32 %v153, -0.125
        %v155 = vrcp.pop %v154
        %v156 = vmul.f32 1.0, %v155
        %v157 = vsel %vm142, %v150, -inf
        %158 = vmax.xlane.f32.xlu0 %v157
        %v159 = vpop.xlane.xlu0 %158
        %v160 = vmul.f32 %v159, -0.125
        %v161 = vrcp.pop %v160
        %v162 = vmul.f32 1.0, %v161
        %v163 = vld [vmem:[%s114 + $0x10] sm:$0xff]
        %v164 = vand.u32 2147483647, %v163
        %v165 = vsel %vm135, %v164, -inf
        %166 = vmax.xlane.f32.xlu0 %v165
        %v167 = vpop.xlane.xlu0 %166
        %v168 = vmul.f32 %v167, -0.125
        %v169 = vrcp.pop %v168
        %v170 = vmul.f32 1.0, %v169
        %v171 = vsel %vm142, %v164, -inf
        %172 = vmax.xlane.f32.xlu0 %v171
        %v173 = vpop.xlane.xlu0 %172
        %v174 = vmul.f32 %v173, -0.125
        %v175 = vrcp.pop %v174
        %v176 = vmul.f32 1.0, %v175
        %v177 = vld [vmem:[%s114 + $0x18] sm:$0xff]
        %v178 = vand.u32 2147483647, %v177
        %v179 = vsel %vm135, %v178, -inf
        %180 = vmax.xlane.f32.xlu0 %v179
        %v181 = vpop.xlane.xlu0 %180
        %v182 = vmul.f32 %v181, -0.125
        %v183 = vrcp.pop %v182
        %v184 = vmul.f32 1.0, %v183
        %v185 = vsel %vm142, %v178, -inf
        %186 = vmax.xlane.f32.xlu0 %v185
        %v187 = vpop.xlane.xlu0 %186
        %v188 = vmul.f32 %v187, -0.125
        %v189 = vrcp.pop %v188
        %v190 = vmul.f32 1.0, %v189
        %v191 = vsel %vm135, %v139, %v146
        %v192 = vsel %vm135, %v154, %v160
        %v193 = vsel %vm135, %v168, %v174
        %v194 = vsel %vm135, %v182, %v188
        %v195 = vsel %vm135, %v141, %v148
        %v196 = vsel %vm135, %v156, %v162
        %v197 = vsel %vm135, %v170, %v176
        %v198 = vsel %vm135, %v184, %v190
        %v199 = vld [vmem:[%s114] sm:$0xff]
        %v200 = vld [vmem:[%s114 + $0x8] sm:$0xff]
        %v201 = vld [vmem:[%s114 + $0x10] sm:$0xff]
        %v202 = vmul.f32 %v199, %v195
        %v203 = vmul.f32 %v200, %v196
        %v204 = vmul.f32 %v201, %v197
        %v205 = vmul.f32 %v177, %v198
        %v206 = vadd.f32 %v202, 8.5
        %v207 = vadd.f32 %v203, 8.5
        %v208 = vadd.f32 %v204, 8.5
        %v209 = vadd.f32 %v205, 8.5
        %v210 = vmin.f32 %v206, 15.0
        %v211 = vmin.f32 %v207, 15.0
        %v212 = vmin.f32 %v208, 15.0
        %v213 = vmin.f32 %v209, 15.0
        %v214 = vfloor.f32 %v210
        %v215 = vfloor.f32 %v211
        %v216 = vfloor.f32 %v212
        %v217 = vfloor.f32 %v213
        %v218 = vsub.f32 %v214, 8.0
        %v219 = vsub.f32 %v215, 8.0
        %v220 = vsub.f32 %v216, 8.0
        %v221 = vsub.f32 %v217, 8.0
        %v222 = vmul.f32 %v218, %v191
        %v223 = vmul.f32 %v219, %v192
        %v224 = vmul.f32 %v220, %v193
        %v225 = vmul.f32 %v221, %v194
        %v226 = vpack.c.bf16 %v222, %v222
        %v227 = vpack.c.bf16 %v223, %v223
        %v228 = vpack.c.bf16 %v224, %v224
        %v229 = vpack.c.bf16 %v225, %v225
        %v234 = vunpack.c.l.b16 %v226
        %v235 = vunpack.c.l.b16 %v227
        %v236 = vunpack.c.l.b16 %v228
        %v237 = vunpack.c.l.b16 %v229
        %v238 = vpack.c.b16 %v235, %v234
        %v239 = vpack.c.b16 %v237, %v236
        %242 = vst [vmem:[%s132] sm:$0xff] %v238
        %243 = vst [vmem:[%s132 + $0x8] sm:$0xff] %v239
        %s244 = sand.u32 %s52, 1
        %s245 = scalar_lea.sflag [#allocation4], %s244
        %s246 = sand.u32 %s52, 1
        %s247 = smul.addr %s246, 16
        %s248 = scalar_lea.vmem [#allocation5], %s247
        // Predicated region
        $region29: #{tpu_custom_call.1} parent=23 // pred_check
          %p249 = pneg %p62
        $region30: #{tpu_custom_call.1} parent=23 // pred_check_branch
          %251 = sbr.rel (%p249) target = $region32
        $region31: #{tpu_custom_call.1} parent=23 // pred_region
          %s253 = ssub.s32 256, 256
          %254 = vsyncadd %s245, %s253
          %s255 = smul.addr %s18, 4
          %s256 = smul.addr %s255, 64
          %s257 = scalar_lea.hbm %s1, %s256
          %s259 = sshll.u32 %s248, 4
          %s260 = int_to_ptr.vmem [resolvable:$true] %s259
          %262 = dma.vmem_to_hbm [thread:$0]  %s260, 256, %s257, %s245
        $region32: #{tpu_custom_call.1} parent=23 // pred_fallthru
          _
      $region24: #{tpu_custom_call.1} parent=5 // pred_fallthru
        _
      %p263 = scmp.le.s32.totalorder 2, %s13
      // Predicated region
      $region33: #{tpu_custom_call.1} parent=5 // pred_check
        %p264 = pneg %p263
      $region34: #{tpu_custom_call.1} parent=5 // pred_check_branch
        %266 = sbr.rel (%p264) target = $region36
      $region35: #{tpu_custom_call.1} parent=5 // pred_region
        %s267 = ssub.s32 %s13, 2
        // Predicated region
        $region37: #{tpu_custom_call.1} parent=35 // pred_check
          %p268 = pneg %p68
        $region38: #{tpu_custom_call.1} parent=35 // pred_check_branch
          %270 = sbr.rel (%p268) target = $region40
        $region39: #{tpu_custom_call.1} parent=35 // pred_region
          %s271 = sand.u32 %s53, 1
          %s272 = scalar_lea.sflag [#allocation4], %s271
          %s273 = sand.u32 %s53, 1
          %s274 = smul.addr %s273, 16
          %s275 = scalar_lea.vmem [#allocation5], %s274
          %276 = dma.done %s272, 256
        $region40: #{tpu_custom_call.1} parent=35 // pred_fallthru
          _
      $region36: #{tpu_custom_call.1} parent=5 // pred_fallthru
        _
    $region6: #{tpu_custom_call.1} parent=1 // loop_footer
      %s17 = sadd.s32 1, %s13
    $region7: #{tpu_custom_call.1} parent=1 // loop_footer_branch
      %12 = sbr.rel target = $region3
    $region8: #{tpu_custom_call.1} parent=1 // loop_exit
      _
    %277 = vsyncpa [#allocation3], 1
    %s278 = scalar_lea.sflag [#allocation3], 1
    %279 = vsyncpa %s278, 1
    %280 = vsyncpa [#allocation4], 1
    %s281 = scalar_lea.sflag [#allocation4], 1
    %282 = vsyncpa %s281, 1

</llo_original>
